<compile_context>
chip_gen: v5e
topology: v5e:2x2
jax: 0.10.0
libtpu: 0.0.40
codegen_flags: <defaults>
</compile_context>

<pallas_src>
import jax
import jax.numpy as jnp
from jax.experimental import pallas as pl
from jax.experimental.pallas import tpu as pltpu


_LANES = 128           # vreg lane width: original rows packed per lane-dense output row
_TB_CAP = 32768        # max batch-tile rows (multiple of 1024)
_X_TILE_BUDGET = 8 * 1024 * 1024   # target bytes for the double-buffered x tile


def _round_up(n, m):
    return (n + m - 1) // m * m


def _logreg_kernel(x_ref, r_ref, b_ref, o_ref):
    # x_ref: (c_rows, 128*D)  f32 VMEM  -- 128 original rows per slab row (pipelined)
    # r_ref: (128*D, 128)     f32 VMEM  -- block-diagonal weights, grid-resident
    # b_ref: (1,)             f32 SMEM  -- bias scalar
    # o_ref: (c_rows, 128)    f32 VMEM  -- lane-dense output slab
    z = jnp.dot(x_ref[...], r_ref[...], preferred_element_type=jnp.float32) + b_ref[0]
    o_ref[...] = 1.0 / (1.0 + jnp.exp(-z))      # exp -> EUP; divide exact (free slot)


def _make_block_diag_rhs(w_flat):
    """R (128*D, 128) with R[l*D + d, l] = w[d]; everything else 0."""
    d = w_flat.shape[0]
    ld = _LANES * d
    lane_of_row = (jnp.arange(ld, dtype=jnp.int32) // d)[:, None]       # (LD, 1)
    cols = jnp.arange(_LANES, dtype=jnp.int32)[None, :]                 # (1, 128)
    w_rep = jnp.tile(w_flat.astype(jnp.float32), _LANES)[:, None]       # (LD, 1)
    return jnp.where(cols == lane_of_row, w_rep, 0.0)                   # (LD, 128)


def logistic_regression_higgs(x, weight, bias, *, tile_rows=None):
    """x: (B, D) f32; weight: (1, D) f32; bias: (1,) f32  ->  (B, 1) f32."""
    x = x.astype(jnp.float32)
    B, D = x.shape
    LD = _LANES * D

    # ---- pack 128 original rows per slab row (metadata-only when B % 128 == 0) ----
    n128 = pl.cdiv(B, _LANES)
    b_pad = n128 * _LANES
    if b_pad != B:
        # One extra copy only for ragged batches; callers with 128-aligned B pay nothing.
        x = jnp.pad(x, ((0, b_pad - B), (0, 0)))
    x2 = x.reshape(n128, LD)

    # ---- tile selection: keep the double-buffered dense x tile ~<= 8 MiB ----
    if tile_rows is None:
        budget_rows = _X_TILE_BUDGET // (2 * 4 * D)
        tile_rows = max(1024, min(_TB_CAP, (budget_rows // 1024) * 1024))
    assert tile_rows % 1024 == 0, "tile_rows must be a multiple of 1024"
    c_rows = tile_rows // _LANES
    if n128 < c_rows:                       # small batch: single (8-sublane aligned) tile
        c_rows = max(8, _round_up(n128, 8))
    n_tiles = pl.cdiv(n128, c_rows)
    out_rows = n_tiles * c_rows             # >= n128; padded tail sliced off below

    w_flat = weight.reshape(D).astype(jnp.float32)
    rhs = _make_block_diag_rhs(w_flat)                  # (LD, 128), ~1.75 MiB for D=28
    b_vec = bias.reshape(1).astype(jnp.float32)         # (1,) scalar -> SMEM

    out2d = pl.pallas_call(
        _logreg_kernel,
        out_shape=jax.ShapeDtypeStruct((out_rows, _LANES), jnp.float32),
        grid_spec=pltpu.PrefetchScalarGridSpec(
            num_scalar_prefetch=0,
            grid=(n_tiles,),
            in_specs=[
                pl.BlockSpec((c_rows, LD), lambda i: (i, 0)),            # x slab (pipelined)
                pl.BlockSpec((LD, _LANES), lambda i: (0, 0)),            # RHS, grid-resident
                pl.BlockSpec(memory_space=pltpu.MemorySpace.SMEM),       # bias scalar
            ],
            out_specs=pl.BlockSpec((c_rows, _LANES), lambda i: (i, 0)),  # lane-dense out
        ),
        compiler_params=pltpu.CompilerParams(
            dimension_semantics=("parallel",),          # independent batch tiles
            vmem_limit_bytes=32 * 1024 * 1024,          # explicit budget (v5e default is 16 MiB)
        ),
    )(x2, rhs, b_vec)

    # lane-dense (out_rows, 128): element [r, c] is original row r*128 + c.
    # Row-major flatten matches original row order; slice off padded tail rows.
    return out2d.reshape(out_rows * _LANES, 1)[:B]


def init_params(key, input_dim):
    """torch.nn.Linear(input_dim, 1) + kaiming_uniform_(relu, fan_in) init."""
    kw, kb = jax.random.split(key)
    w_bound = (6.0 / input_dim) ** 0.5            # kaiming uniform, relu gain
    weight = jax.random.uniform(kw, (1, input_dim), jnp.float32, -w_bound, w_bound)
    b_bound = 1.0 / (input_dim ** 0.5)            # torch Linear default bias init
    bias = jax.random.uniform(kb, (1,), jnp.float32, -b_bound, b_bound)
    return weight, bias


if __name__ == "__main__":
    key = jax.random.PRNGKey(0)
    k_small, k_big, k_p = jax.random.split(key, 3)

    input_dim = 28                                # HIGGS feature dim
    weight, bias = init_params(k_p, input_dim)

    def ref(xv):
        # exact-f32 (VPU) reference
        return jax.nn.sigmoid(jnp.sum(xv * weight, axis=-1, keepdims=True) + bias)

    # 1) tiny batch: single padded-tile path
    x_small = jax.random.normal(k_small, (8, input_dim), dtype=jnp.float32)
    out_small = jax.block_until_ready(logistic_regression_higgs(x_small, weight, bias))
    assert out_small.shape == (8, 1)

    # 2) multi-tile grid with a ragged last tile (small tile_rows just for the test)
    x_big = jax.random.normal(k_big, (2500, input_dim), dtype=jnp.float32)
    out_big = jax.block_until_ready(
        logistic_regression_higgs(x_big, weight, bias, tile_rows=1024))
    assert out_big.shape == (2500, 1)

    # MXU f32 dots use bf16 operand rounding at default precision -> loose tolerance.
    assert jnp.allclose(out_small, ref(x_small), atol=1e-2)
    assert jnp.allclose(out_big, ref(x_big), atol=1e-2)

    print("KERNEL_OK")
</pallas_src>

<mosaic_0001>
module attributes {stable_mosaic.version = 11 : i64} {
  func.func @_logreg_kernel(%arg0: i32, %arg1: memref<8x3584xf32, #tpu.memory_space<vmem>>, %arg2: memref<3584x128xf32, #tpu.memory_space<vmem>>, %arg3: memref<1xf32, #tpu.memory_space<smem>>, %arg4: memref<8x128xf32, #tpu.memory_space<vmem>>) attributes {dimension_semantics = [#tpu.dimension_semantics<parallel>], iteration_bounds = array<i64: 1>, scalar_prefetch = 0 : i64, scratch_operands = 0 : i64, tpu.core_type = #tpu.core_type<tc>, window_params = [{transform_indices = @transform_0, window_bounds = array<i64: 8, 3584>}, {pipeline_mode = #tpu.pipeline_mode<synchronous>, transform_indices = @transform_1, window_bounds = array<i64: 3584, 128>}, {transform_indices = @transform_2, window_bounds = array<i64: 1>}, {transform_indices = @transform_3, window_bounds = array<i64: 8, 128>}]} {
    %c0 = arith.constant 0 : index
    %c0_0 = arith.constant 0 : index
    %0 = vector.load %arg1[%c0, %c0_0] : memref<8x3584xf32, #tpu.memory_space<vmem>>, vector<8x3584xf32>
    %c0_1 = arith.constant 0 : index
    %c0_2 = arith.constant 0 : index
    %1 = vector.load %arg2[%c0_1, %c0_2] : memref<3584x128xf32, #tpu.memory_space<vmem>>, vector<3584x128xf32>
    %cst = arith.constant dense<0.000000e+00> : vector<8x128xf32>
    %2 = tpu.matmul %0, %1, %cst {dimension_numbers = #tpu.dot_dimension_numbers<[1], [0], [0], [1], [0, 0, 1, 1], [], []>} : vector<8x3584xf32>, vector<3584x128xf32>, vector<8x128xf32> -> vector<8x128xf32>
    %c0_3 = arith.constant 0 : index
    %3 = memref.load %arg3[%c0_3] : memref<1xf32, #tpu.memory_space<smem>>
    %4 = vector.broadcast %3 : f32 to vector<8x128xf32>
    %5 = arith.addf %2, %4 : vector<8x128xf32>
    %cst_4 = arith.constant 0.000000e+00 : f32
    %6 = vector.broadcast %cst_4 : f32 to vector<8x128xf32>
    %7 = arith.subf %6, %5 : vector<8x128xf32>
    %8 = math.exp %7 : vector<8x128xf32>
    %cst_5 = arith.constant 1.000000e+00 : f32
    %9 = vector.broadcast %cst_5 : f32 to vector<8x128xf32>
    %10 = arith.addf %9, %8 : vector<8x128xf32>
    %cst_6 = arith.constant 1.000000e+00 : f32
    %11 = vector.broadcast %cst_6 : f32 to vector<8x128xf32>
    %12 = arith.divf %11, %10 : vector<8x128xf32>
    %c0_7 = arith.constant 0 : index
    %c0_8 = arith.constant 0 : index
    %13 = vector.load %arg4[%c0_7, %c0_8] : memref<8x128xf32, #tpu.memory_space<vmem>>, vector<8x128xf32>
    tpu.vector_store %arg4[%c0_7, %c0_8], %12 {strides = array<i32>} : memref<8x128xf32, #tpu.memory_space<vmem>>, vector<8x128xf32>,
    return
  }
  func.func @transform_0(%arg0: i32) -> (i32, i32) {
    %c0_i32 = arith.constant 0 : i32
    %c0_i32_0 = arith.constant 0 : i32
    return %arg0, %c0_i32 : i32, i32
  }
  func.func @transform_1(%arg0: i32) -> (i32, i32) {
    %c0_i32 = arith.constant 0 : i32
    %c0_i32_0 = arith.constant 0 : i32
    %c0_i32_1 = arith.constant 0 : i32
    return %c0_i32, %c0_i32_0 : i32, i32
  }
  func.func @transform_2(%arg0: i32) -> i32 {
    %c0_i32 = arith.constant 0 : i32
    %c0_i32_0 = arith.constant 0 : i32
    return %c0_i32 : i32
  }
  func.func @transform_3(%arg0: i32) -> (i32, i32) {
    %c0_i32 = arith.constant 0 : i32
    %c0_i32_0 = arith.constant 0 : i32
    return %arg0, %c0_i32 : i32, i32
  }
}

</mosaic_0001>

<llo_original>
// kernel: tpu_custom_call.1
$region0: #{tpu_custom_call.1}
  #allocation0 [shape = 'u32[]', space=smem, size = 0x4, offset = 0x4, fixed_abs, tag = 'smem constant byte address 0x4 - core index']
  #allocation1 [shape = 'u32[72,128]{1,0:T(1,128)}', space=vmem, size = 0x9000, scoped, tag = 'internal scratch']
  #allocation2 [shape = 'f32[1]{0:T(128)S(6)}', space=smem, size = 0x200, scoped, tag = 'scoped memory for tpu_custom_call.1']
  %s0 = inlined_call_operand.hbm [shape: f32[1,3584], index: 0, kind: input, shape index: {}]
  %s1 = inlined_call_operand.hbm [shape: f32[3584,128], index: 1, kind: input, shape index: {}]
  %s2 = inlined_call_operand.<no memory space> [shape: f32[1], index: 2, kind: input, shape index: {}]
  %s3 = inlined_call_operand.hbm [shape: f32[8,128], index: 3, kind: output, shape index: {}]
  %s4 = sld [smem:[#allocation0]]
  $region30: #{tpu_custom_call.1} parent=0
    _
  %s6 = ssub.s32 1, %s4
  %s7 = scalar_select 0, %s6, %s4
  %8 = sst [smem:[#allocation2]] %s2
  $region1: #{tpu_custom_call.1} parent=0
    #allocation3 [shape = 'u8[114688]{0}', space=vmem, size = 0x1c000, scoped, tag = 'input window, operand 0, single buffered']
    #allocation4 [shape = 's32[1]{0}', space=sflag, size = 0x4, scoped, tag = 'scoped memory for tpu_custom_call.1']
    #allocation5 [shape = 's32[1]{0}', space=sflag, size = 0x4, scoped, tag = 'scoped memory for tpu_custom_call.1']
    #allocation6 [shape = 'u8[1835008]{0}', space=vmem, size = 0x1c0000, scoped, tag = 'input window, operand 1, single buffered']
    #allocation7 [shape = 's32[1]{0}', space=sflag, size = 0x4, scoped, tag = 'scoped memory for tpu_custom_call.1']
    #allocation8 [shape = 'u8[4096]{0}', space=vmem, size = 0x1000, scoped, tag = 'output window, operand 0, single buffered']
    %9 = vsyncpa [#allocation4], 0
    %10 = vsyncpa [#allocation7], 0
    %11 = vsyncpa [#allocation5], 0
    // Predicated region
    $region2: #{tpu_custom_call.1} parent=1 // pred_check
      _
    $region3: #{tpu_custom_call.1} parent=1 // pred_check_branch
      %13 = sbr.rel (0) target = $region5
    $region4: #{tpu_custom_call.1} parent=1 // pred_region
      %15 = vsyncadd [#allocation4], 3136
      %s16 = sshll.u32 %s0, 4
      %s17 = int_to_ptr.hbm [resolvable:$true] %s16
      %s18 = sshll.u32 [#allocation3], 4
      %s19 = int_to_ptr.vmem [resolvable:$true] %s18
      %24 = dma.hbm_to_vmem [thread:$0]  %s17, 448, %s19, [#allocation4], 448, 448, 28
    $region5: #{tpu_custom_call.1} parent=1 // pred_fallthru
      _
    // Predicated region
    $region6: #{tpu_custom_call.1} parent=1 // pred_check
      _
    $region7: #{tpu_custom_call.1} parent=1 // pred_check_branch
      %26 = sbr.rel (0) target = $region9
    $region8: #{tpu_custom_call.1} parent=1 // pred_region
      %28 = vsyncadd [#allocation7], 0
      %s29 = sshll.u32 %s1, 4
      %s30 = int_to_ptr.hbm [resolvable:$true] %s29
      %s31 = sshll.u32 [#allocation6], 4
      %s32 = int_to_ptr.vmem [resolvable:$true] %s31
      %37 = dma.hbm_to_vmem [thread:$0]  %s30, 57344, %s32, [#allocation7], 128, 128, 8
    $region9: #{tpu_custom_call.1} parent=1 // pred_fallthru
      _
    // Predicated region
    $region10: #{tpu_custom_call.1} parent=1 // pred_check
      _
    $region11: #{tpu_custom_call.1} parent=1 // pred_check_branch
      %39 = sbr.rel (0) target = $region13
    $region12: #{tpu_custom_call.1} parent=1 // pred_region
      _
    $region13: #{tpu_custom_call.1} parent=1 // pred_fallthru
      _
    // Predicated region
    $region14: #{tpu_custom_call.1} parent=1 // pred_check
      _
    $region15: #{tpu_custom_call.1} parent=1 // pred_check_branch
      %41 = sbr.rel (0) target = $region17
    $region16: #{tpu_custom_call.1} parent=1 // pred_region
      %43 = dma.done [#allocation4], 3584
    $region17: #{tpu_custom_call.1} parent=1 // pred_fallthru
      _
    // Predicated region
    $region18: #{tpu_custom_call.1} parent=1 // pred_check
      _
    $region19: #{tpu_custom_call.1} parent=1 // pred_check_branch
      %45 = sbr.rel (0) target = $region21
    $region20: #{tpu_custom_call.1} parent=1 // pred_region
      %47 = dma.done [#allocation7], 57344
    $region21: #{tpu_custom_call.1} parent=1 // pred_fallthru
      _
    %v48 = vld [vmem:[#allocation3] sm:$0xff]
    %v49 = vld [vmem:[#allocation3 + $0x8] sm:$0xff]
    %v50 = vld [vmem:[#allocation3 + $0x10] sm:$0xff]
    %v51 = vld [vmem:[#allocation3 + $0x18] sm:$0xf]
    %v52 = vld [vmem:[#allocation3 + $0x1c] sm:$0xff]
    %v53 = vld [vmem:[#allocation3 + $0x24] sm:$0xff]
    %v54 = vld [vmem:[#allocation3 + $0x2c] sm:$0xff]
    %v55 = vld [vmem:[#allocation3 + $0x34] sm:$0xf]
    %v56 = vld [vmem:[#allocation3 + $0x38] sm:$0xff]
    %v57 = vld [vmem:[#allocation3 + $0x40] sm:$0xff]
    %v58 = vld [vmem:[#allocation3 + $0x48] sm:$0xff]
    %v59 = vld [vmem:[#allocation3 + $0x50] sm:$0xf]
    %v60 = vld [vmem:[#allocation3 + $0x54] sm:$0xff]
    %v61 = vld [vmem:[#allocation3 + $0x5c] sm:$0xff]
    %v62 = vld [vmem:[#allocation3 + $0x64] sm:$0xff]
    %v63 = vld [vmem:[#allocation3 + $0x6c] sm:$0xf]
    %v64 = vld [vmem:[#allocation3 + $0x70] sm:$0xff]
    %v65 = vld [vmem:[#allocation3 + $0x78] sm:$0xff]
    %v66 = vld [vmem:[#allocation3 + $0x80] sm:$0xff]
    %v67 = vld [vmem:[#allocation3 + $0x88] sm:$0xf]
    %v68 = vld [vmem:[#allocation3 + $0x8c] sm:$0xff]
    %v69 = vld [vmem:[#allocation3 + $0x94] sm:$0xff]
    %v70 = vld [vmem:[#allocation3 + $0x9c] sm:$0xff]
    %v71 = vld [vmem:[#allocation3 + $0xa4] sm:$0xf]
    %v72 = vld [vmem:[#allocation3 + $0xa8] sm:$0xff]
    %v73 = vld [vmem:[#allocation3 + $0xb0] sm:$0xff]
    %v74 = vld [vmem:[#allocation3 + $0xb8] sm:$0xff]
    %v75 = vld [vmem:[#allocation3 + $0xc0] sm:$0xf]
    %v76 = vld [vmem:[#allocation3 + $0xc4] sm:$0xff]
    %v77 = vld [vmem:[#allocation3 + $0xcc] sm:$0xff]
    %v78 = vld [vmem:[#allocation3 + $0xd4] sm:$0xff]
    %v79 = vld [vmem:[#allocation3 + $0xdc] sm:$0xf]
    %v80 = vld [vmem:[#allocation6] sm:$0xff]
    %v81 = vld [vmem:[#allocation6 + $0x8] sm:$0xff]
    %v82 = vld [vmem:[#allocation6 + $0x10] sm:$0xff]
    %v83 = vld [vmem:[#allocation6 + $0x18] sm:$0xff]
    %v84 = vld [vmem:[#allocation6 + $0x20] sm:$0xff]
    %v85 = vld [vmem:[#allocation6 + $0x28] sm:$0xff]
    %v86 = vld [vmem:[#allocation6 + $0x30] sm:$0xff]
    %v87 = vld [vmem:[#allocation6 + $0x38] sm:$0xff]
    %v88 = vld [vmem:[#allocation6 + $0x40] sm:$0xff]
    %v89 = vld [vmem:[#allocation6 + $0x48] sm:$0xff]
    %v90 = vld [vmem:[#allocation6 + $0x50] sm:$0xff]
    %v91 = vld [vmem:[#allocation6 + $0x58] sm:$0xff]
    %v92 = vld [vmem:[#allocation6 + $0x60] sm:$0xff]
    %v93 = vld [vmem:[#allocation6 + $0x68] sm:$0xff]
    %v94 = vld [vmem:[#allocation6 + $0x70] sm:$0xff]
    %v95 = vld [vmem:[#allocation6 + $0x78] sm:$0xff]
    %v96 = vld [vmem:[#allocation6 + $0x80] sm:$0xff]
    %v97 = vld [vmem:[#allocation6 + $0x88] sm:$0xff]
    %v98 = vld [vmem:[#allocation6 + $0x90] sm:$0xff]
    %v99 = vld [vmem:[#allocation6 + $0x98] sm:$0xff]
    %v100 = vld [vmem:[#allocation6 + $0xa0] sm:$0xff]
    %v101 = vld [vmem:[#allocation6 + $0xa8] sm:$0xff]
    %v102 = vld [vmem:[#allocation6 + $0xb0] sm:$0xff]
    %v103 = vld [vmem:[#allocation6 + $0xb8] sm:$0xff]
    %v104 = vld [vmem:[#allocation6 + $0xc0] sm:$0xff]
    %v105 = vld [vmem:[#allocation6 + $0xc8] sm:$0xff]
    %v106 = vld [vmem:[#allocation6 + $0xd0] sm:$0xff]
    %v107 = vld [vmem:[#allocation6 + $0xd8] sm:$0xff]
    %v108 = vld [vmem:[#allocation6 + $0xe0] sm:$0xff]
    %v109 = vld [vmem:[#allocation6 + $0xe8] sm:$0xff]
    %v110 = vld [vmem:[#allocation6 + $0xf0] sm:$0xff]
    %v111 = vld [vmem:[#allocation6 + $0xf8] sm:$0xff]
    %v112 = vld [vmem:[#allocation6 + $0x100] sm:$0xff]
    %v113 = vld [vmem:[#allocation6 + $0x108] sm:$0xff]
    %v114 = vld [vmem:[#allocation6 + $0x110] sm:$0xff]
    %v115 = vld [vmem:[#allocation6 + $0x118] sm:$0xff]
    %v116 = vld [vmem:[#allocation6 + $0x120] sm:$0xff]
    %v117 = vld [vmem:[#allocation6 + $0x128] sm:$0xff]
    %v118 = vld [vmem:[#allocation6 + $0x130] sm:$0xff]
    %v119 = vld [vmem:[#allocation6 + $0x138] sm:$0xff]
    %v120 = vld [vmem:[#allocation6 + $0x140] sm:$0xff]
    %v121 = vld [vmem:[#allocation6 + $0x148] sm:$0xff]
    %v122 = vld [vmem:[#allocation6 + $0x150] sm:$0xff]
    %v123 = vld [vmem:[#allocation6 + $0x158] sm:$0xff]
    %v124 = vld [vmem:[#allocation6 + $0x160] sm:$0xff]
    %v125 = vld [vmem:[#allocation6 + $0x168] sm:$0xff]
    %v126 = vld [vmem:[#allocation6 + $0x170] sm:$0xff]
    %v127 = vld [vmem:[#allocation6 + $0x178] sm:$0xff]
    %v128 = vld [vmem:[#allocation6 + $0x180] sm:$0xff]
    %v129 = vld [vmem:[#allocation6 + $0x188] sm:$0xff]
    %v130 = vld [vmem:[#allocation6 + $0x190] sm:$0xff]
    %v131 = vld [vmem:[#allocation6 + $0x198] sm:$0xff]
    %v132 = vld [vmem:[#allocation6 + $0x1a0] sm:$0xff]
    %v133 = vld [vmem:[#allocation6 + $0x1a8] sm:$0xff]
    %v134 = vld [vmem:[#allocation6 + $0x1b0] sm:$0xff]
    %v135 = vld [vmem:[#allocation6 + $0x1b8] sm:$0xff]
    %v136 = vld [vmem:[#allocation6 + $0x1c0] sm:$0xff]
    %v137 = vld [vmem:[#allocation6 + $0x1c8] sm:$0xff]
    %v138 = vld [vmem:[#allocation6 + $0x1d0] sm:$0xff]
    %v139 = vld [vmem:[#allocation6 + $0x1d8] sm:$0xff]
    %v140 = vld [vmem:[#allocation6 + $0x1e0] sm:$0xff]
    %v141 = vld [vmem:[#allocation6 + $0x1e8] sm:$0xff]
    %v142 = vld [vmem:[#allocation6 + $0x1f0] sm:$0xff]
    %v143 = vld [vmem:[#allocation6 + $0x1f8] sm:$0xff]
    %v144 = vld [vmem:[#allocation6 + $0x200] sm:$0xff]
    %v145 = vld [vmem:[#allocation6 + $0x208] sm:$0xff]
    %v146 = vld [vmem:[#allocation6 + $0x210] sm:$0xff]
    %v147 = vld [vmem:[#allocation6 + $0x218] sm:$0xff]
    %v148 = vld [vmem:[#allocation6 + $0x220] sm:$0xff]
    %v149 = vld [vmem:[#allocation6 + $0x228] sm:$0xff]
    %v150 = vld [vmem:[#allocation6 + $0x230] sm:$0xff]
    %v151 = vld [vmem:[#allocation6 + $0x238] sm:$0xff]
    %v152 = vld [vmem:[#allocation6 + $0x240] sm:$0xff]
    %v153 = vld [vmem:[#allocation6 + $0x248] sm:$0xff]
    %v154 = vld [vmem:[#allocation6 + $0x250] sm:$0xff]
    %v155 = vld [vmem:[#allocation6 + $0x258] sm:$0xff]
    %v156 = vld [vmem:[#allocation6 + $0x260] sm:$0xff]
    %v157 = vld [vmem:[#allocation6 + $0x268] sm:$0xff]
    %v158 = vld [vmem:[#allocation6 + $0x270] sm:$0xff]
    %v159 = vld [vmem:[#allocation6 + $0x278] sm:$0xff]
    %v160 = vld [vmem:[#allocation6 + $0x280] sm:$0xff]
    %v161 = vld [vmem:[#allocation6 + $0x288] sm:$0xff]
    %v162 = vld [vmem:[#allocation6 + $0x290] sm:$0xff]
    %v163 = vld [vmem:[#allocation6 + $0x298] sm:$0xff]
    %v164 = vld [vmem:[#allocation6 + $0x2a0] sm:$0xff]
    %v165 = vld [vmem:[#allocation6 + $0x2a8] sm:$0xff]
    %v166 = vld [vmem:[#allocation6 + $0x2b0] sm:$0xff]
    %v167 = vld [vmem:[#allocation6 + $0x2b8] sm:$0xff]
    %v168 = vld [vmem:[#allocation6 + $0x2c0] sm:$0xff]
    %v169 = vld [vmem:[#allocation6 + $0x2c8] sm:$0xff]
    %v170 = vld [vmem:[#allocation6 + $0x2d0] sm:$0xff]
    %v171 = vld [vmem:[#allocation6 + $0x2d8] sm:$0xff]
    %v172 = vld [vmem:[#allocation6 + $0x2e0] sm:$0xff]
    %v173 = vld [vmem:[#allocation6 + $0x2e8] sm:$0xff]
    %v174 = vld [vmem:[#allocation6 + $0x2f0] sm:$0xff]
    %v175 = vld [vmem:[#allocation6 + $0x2f8] sm:$0xff]
    %v176 = vld [vmem:[#allocation6 + $0x300] sm:$0xff]
    %v177 = vld [vmem:[#allocation6 + $0x308] sm:$0xff]
    %v178 = vld [vmem:[#allocation6 + $0x310] sm:$0xff]
    %v179 = vld [vmem:[#allocation6 + $0x318] sm:$0xff]
    %v180 = vld [vmem:[#allocation6 + $0x320] sm:$0xff]
    %v181 = vld [vmem:[#allocation6 + $0x328] sm:$0xff]
    %v182 = vld [vmem:[#allocation6 + $0x330] sm:$0xff]
    %v183 = vld [vmem:[#allocation6 + $0x338] sm:$0xff]
    %v184 = vld [vmem:[#allocation6 + $0x340] sm:$0xff]
    %v185 = vld [vmem:[#allocation6 + $0x348] sm:$0xff]
    %v186 = vld [vmem:[#allocation6 + $0x350] sm:$0xff]
    %v187 = vld [vmem:[#allocation6 + $0x358] sm:$0xff]
    %v188 = vld [vmem:[#allocation6 + $0x360] sm:$0xff]
    %v189 = vld [vmem:[#allocation6 + $0x368] sm:$0xff]
    %v190 = vld [vmem:[#allocation6 + $0x370] sm:$0xff]
    %v191 = vld [vmem:[#allocation6 + $0x378] sm:$0xff]
    %v192 = vld [vmem:[#allocation6 + $0x380] sm:$0xff]
    %v193 = vld [vmem:[#allocation6 + $0x388] sm:$0xff]
    %v194 = vld [vmem:[#allocation6 + $0x390] sm:$0xff]
    %v195 = vld [vmem:[#allocation6 + $0x398] sm:$0xff]
    %v196 = vld [vmem:[#allocation6 + $0x3a0] sm:$0xff]
    %v197 = vld [vmem:[#allocation6 + $0x3a8] sm:$0xff]
    %v198 = vld [vmem:[#allocation6 + $0x3b0] sm:$0xff]
    %v199 = vld [vmem:[#allocation6 + $0x3b8] sm:$0xff]
    %v200 = vld [vmem:[#allocation6 + $0x3c0] sm:$0xff]
    %v201 = vld [vmem:[#allocation6 + $0x3c8] sm:$0xff]
    %v202 = vld [vmem:[#allocation6 + $0x3d0] sm:$0xff]
    %v203 = vld [vmem:[#allocation6 + $0x3d8] sm:$0xff]
    %v204 = vld [vmem:[#allocation6 + $0x3e0] sm:$0xff]
    %v205 = vld [vmem:[#allocation6 + $0x3e8] sm:$0xff]
    %v206 = vld [vmem:[#allocation6 + $0x3f0] sm:$0xff]
    %v207 = vld [vmem:[#allocation6 + $0x3f8] sm:$0xff]
    %v208 = vld [vmem:[#allocation6 + $0x400] sm:$0xff]
    %v209 = vld [vmem:[#allocation6 + $0x408] sm:$0xff]
    %v210 = vld [vmem:[#allocation6 + $0x410] sm:$0xff]
    %v211 = vld [vmem:[#allocation6 + $0x418] sm:$0xff]
    %v212 = vld [vmem:[#allocation6 + $0x420] sm:$0xff]
    %v213 = vld [vmem:[#allocation6 + $0x428] sm:$0xff]
    %v214 = vld [vmem:[#allocation6 + $0x430] sm:$0xff]
    %v215 = vld [vmem:[#allocation6 + $0x438] sm:$0xff]
    %v216 = vld [vmem:[#allocation6 + $0x440] sm:$0xff]
    %v217 = vld [vmem:[#allocation6 + $0x448] sm:$0xff]
    %v218 = vld [vmem:[#allocation6 + $0x450] sm:$0xff]
    %v219 = vld [vmem:[#allocation6 + $0x458] sm:$0xff]
    %v220 = vld [vmem:[#allocation6 + $0x460] sm:$0xff]
    %v221 = vld [vmem:[#allocation6 + $0x468] sm:$0xff]
    %v222 = vld [vmem:[#allocation6 + $0x470] sm:$0xff]
    %v223 = vld [vmem:[#allocation6 + $0x478] sm:$0xff]
    %v224 = vld [vmem:[#allocation6 + $0x480] sm:$0xff]
    %v225 = vld [vmem:[#allocation6 + $0x488] sm:$0xff]
    %v226 = vld [vmem:[#allocation6 + $0x490] sm:$0xff]
    %v227 = vld [vmem:[#allocation6 + $0x498] sm:$0xff]
    %v228 = vld [vmem:[#allocation6 + $0x4a0] sm:$0xff]
    %v229 = vld [vmem:[#allocation6 + $0x4a8] sm:$0xff]
    %v230 = vld [vmem:[#allocation6 + $0x4b0] sm:$0xff]
    %v231 = vld [vmem:[#allocation6 + $0x4b8] sm:$0xff]
    %v232 = vld [vmem:[#allocation6 + $0x4c0] sm:$0xff]
    %v233 = vld [vmem:[#allocation6 + $0x4c8] sm:$0xff]
    %v234 = vld [vmem:[#allocation6 + $0x4d0] sm:$0xff]
    %v235 = vld [vmem:[#allocation6 + $0x4d8] sm:$0xff]
    %v236 = vld [vmem:[#allocation6 + $0x4e0] sm:$0xff]
    %v237 = vld [vmem:[#allocation6 + $0x4e8] sm:$0xff]
    %v238 = vld [vmem:[#allocation6 + $0x4f0] sm:$0xff]
    %v239 = vld [vmem:[#allocation6 + $0x4f8] sm:$0xff]
    %v240 = vld [vmem:[#allocation6 + $0x500] sm:$0xff]
    %v241 = vld [vmem:[#allocation6 + $0x508] sm:$0xff]
    %v242 = vld [vmem:[#allocation6 + $0x510] sm:$0xff]
    %v243 = vld [vmem:[#allocation6 + $0x518] sm:$0xff]
    %v244 = vld [vmem:[#allocation6 + $0x520] sm:$0xff]
    %v245 = vld [vmem:[#allocation6 + $0x528] sm:$0xff]
    %v246 = vld [vmem:[#allocation6 + $0x530] sm:$0xff]
    %v247 = vld [vmem:[#allocation6 + $0x538] sm:$0xff]
    %v248 = vld [vmem:[#allocation6 + $0x540] sm:$0xff]
    %v249 = vld [vmem:[#allocation6 + $0x548] sm:$0xff]
    %v250 = vld [vmem:[#allocation6 + $0x550] sm:$0xff]
    %v251 = vld [vmem:[#allocation6 + $0x558] sm:$0xff]
    %v252 = vld [vmem:[#allocation6 + $0x560] sm:$0xff]
    %v253 = vld [vmem:[#allocation6 + $0x568] sm:$0xff]
    %v254 = vld [vmem:[#allocation6 + $0x570] sm:$0xff]
    %v255 = vld [vmem:[#allocation6 + $0x578] sm:$0xff]
    %v256 = vld [vmem:[#allocation6 + $0x580] sm:$0xff]
    %v257 = vld [vmem:[#allocation6 + $0x588] sm:$0xff]
    %v258 = vld [vmem:[#allocation6 + $0x590] sm:$0xff]
    %v259 = vld [vmem:[#allocation6 + $0x598] sm:$0xff]
    %v260 = vld [vmem:[#allocation6 + $0x5a0] sm:$0xff]
    %v261 = vld [vmem:[#allocation6 + $0x5a8] sm:$0xff]
    %v262 = vld [vmem:[#allocation6 + $0x5b0] sm:$0xff]
    %v263 = vld [vmem:[#allocation6 + $0x5b8] sm:$0xff]
    %v264 = vld [vmem:[#allocation6 + $0x5c0] sm:$0xff]
    %v265 = vld [vmem:[#allocation6 + $0x5c8] sm:$0xff]
    %v266 = vld [vmem:[#allocation6 + $0x5d0] sm:$0xff]
    %v267 = vld [vmem:[#allocation6 + $0x5d8] sm:$0xff]
    %v268 = vld [vmem:[#allocation6 + $0x5e0] sm:$0xff]
    %v269 = vld [vmem:[#allocation6 + $0x5e8] sm:$0xff]
    %v270 = vld [vmem:[#allocation6 + $0x5f0] sm:$0xff]
    %v271 = vld [vmem:[#allocation6 + $0x5f8] sm:$0xff]
    %v272 = vld [vmem:[#allocation6 + $0x600] sm:$0xff]
    %v273 = vld [vmem:[#allocation6 + $0x608] sm:$0xff]
    %v274 = vld [vmem:[#allocation6 + $0x610] sm:$0xff]
    %v275 = vld [vmem:[#allocation6 + $0x618] sm:$0xff]
    %v276 = vld [vmem:[#allocation6 + $0x620] sm:$0xff]
    %v277 = vld [vmem:[#allocation6 + $0x628] sm:$0xff]
    %v278 = vld [vmem:[#allocation6 + $0x630] sm:$0xff]
    %v279 = vld [vmem:[#allocation6 + $0x638] sm:$0xff]
    %v280 = vld [vmem:[#allocation6 + $0x640] sm:$0xff]
    %v281 = vld [vmem:[#allocation6 + $0x648] sm:$0xff]
    %v282 = vld [vmem:[#allocation6 + $0x650] sm:$0xff]
    %v283 = vld [vmem:[#allocation6 + $0x658] sm:$0xff]
    %v284 = vld [vmem:[#allocation6 + $0x660] sm:$0xff]
    %v285 = vld [vmem:[#allocation6 + $0x668] sm:$0xff]
    %v286 = vld [vmem:[#allocation6 + $0x670] sm:$0xff]
    %v287 = vld [vmem:[#allocation6 + $0x678] sm:$0xff]
    %v288 = vld [vmem:[#allocation6 + $0x680] sm:$0xff]
    %v289 = vld [vmem:[#allocation6 + $0x688] sm:$0xff]
    %v290 = vld [vmem:[#allocation6 + $0x690] sm:$0xff]
    %v291 = vld [vmem:[#allocation6 + $0x698] sm:$0xff]
    %v292 = vld [vmem:[#allocation6 + $0x6a0] sm:$0xff]
    %v293 = vld [vmem:[#allocation6 + $0x6a8] sm:$0xff]
    %v294 = vld [vmem:[#allocation6 + $0x6b0] sm:$0xff]
    %v295 = vld [vmem:[#allocation6 + $0x6b8] sm:$0xff]
    %v296 = vld [vmem:[#allocation6 + $0x6c0] sm:$0xff]
    %v297 = vld [vmem:[#allocation6 + $0x6c8] sm:$0xff]
    %v298 = vld [vmem:[#allocation6 + $0x6d0] sm:$0xff]
    %v299 = vld [vmem:[#allocation6 + $0x6d8] sm:$0xff]
    %v300 = vld [vmem:[#allocation6 + $0x6e0] sm:$0xff]
    %v301 = vld [vmem:[#allocation6 + $0x6e8] sm:$0xff]
    %v302 = vld [vmem:[#allocation6 + $0x6f0] sm:$0xff]
    %v303 = vld [vmem:[#allocation6 + $0x6f8] sm:$0xff]
    %v304 = vld [vmem:[#allocation6 + $0x700] sm:$0xff]
    %v305 = vld [vmem:[#allocation6 + $0x708] sm:$0xff]
    %v306 = vld [vmem:[#allocation6 + $0x710] sm:$0xff]
    %v307 = vld [vmem:[#allocation6 + $0x718] sm:$0xff]
    %v308 = vld [vmem:[#allocation6 + $0x720] sm:$0xff]
    %v309 = vld [vmem:[#allocation6 + $0x728] sm:$0xff]
    %v310 = vld [vmem:[#allocation6 + $0x730] sm:$0xff]
    %v311 = vld [vmem:[#allocation6 + $0x738] sm:$0xff]
    %v312 = vld [vmem:[#allocation6 + $0x740] sm:$0xff]
    %v313 = vld [vmem:[#allocation6 + $0x748] sm:$0xff]
    %v314 = vld [vmem:[#allocation6 + $0x750] sm:$0xff]
    %v315 = vld [vmem:[#allocation6 + $0x758] sm:$0xff]
    %v316 = vld [vmem:[#allocation6 + $0x760] sm:$0xff]
    %v317 = vld [vmem:[#allocation6 + $0x768] sm:$0xff]
    %v318 = vld [vmem:[#allocation6 + $0x770] sm:$0xff]
    %v319 = vld [vmem:[#allocation6 + $0x778] sm:$0xff]
    %v320 = vld [vmem:[#allocation6 + $0x780] sm:$0xff]
    %v321 = vld [vmem:[#allocation6 + $0x788] sm:$0xff]
    %v322 = vld [vmem:[#allocation6 + $0x790] sm:$0xff]
    %v323 = vld [vmem:[#allocation6 + $0x798] sm:$0xff]
    %v324 = vld [vmem:[#allocation6 + $0x7a0] sm:$0xff]
    %v325 = vld [vmem:[#allocation6 + $0x7a8] sm:$0xff]
    %v326 = vld [vmem:[#allocation6 + $0x7b0] sm:$0xff]
    %v327 = vld [vmem:[#allocation6 + $0x7b8] sm:$0xff]
    %v328 = vld [vmem:[#allocation6 + $0x7c0] sm:$0xff]
    %v329 = vld [vmem:[#allocation6 + $0x7c8] sm:$0xff]
    %v330 = vld [vmem:[#allocation6 + $0x7d0] sm:$0xff]
    %v331 = vld [vmem:[#allocation6 + $0x7d8] sm:$0xff]
    %v332 = vld [vmem:[#allocation6 + $0x7e0] sm:$0xff]
    %v333 = vld [vmem:[#allocation6 + $0x7e8] sm:$0xff]
    %v334 = vld [vmem:[#allocation6 + $0x7f0] sm:$0xff]
    %v335 = vld [vmem:[#allocation6 + $0x7f8] sm:$0xff]
    %v336 = vld [vmem:[#allocation6 + $0x800] sm:$0xff]
    %v337 = vld [vmem:[#allocation6 + $0x808] sm:$0xff]
    %v338 = vld [vmem:[#allocation6 + $0x810] sm:$0xff]
    %v339 = vld [vmem:[#allocation6 + $0x818] sm:$0xff]
    %v340 = vld [vmem:[#allocation6 + $0x820] sm:$0xff]
    %v341 = vld [vmem:[#allocation6 + $0x828] sm:$0xff]
    %v342 = vld [vmem:[#allocation6 + $0x830] sm:$0xff]
    %v343 = vld [vmem:[#allocation6 + $0x838] sm:$0xff]
    %v344 = vld [vmem:[#allocation6 + $0x840] sm:$0xff]
    %v345 = vld [vmem:[#allocation6 + $0x848] sm:$0xff]
    %v346 = vld [vmem:[#allocation6 + $0x850] sm:$0xff]
    %v347 = vld [vmem:[#allocation6 + $0x858] sm:$0xff]
    %v348 = vld [vmem:[#allocation6 + $0x860] sm:$0xff]
    %v349 = vld [vmem:[#allocation6 + $0x868] sm:$0xff]
    %v350 = vld [vmem:[#allocation6 + $0x870] sm:$0xff]
    %v351 = vld [vmem:[#allocation6 + $0x878] sm:$0xff]
    %v352 = vld [vmem:[#allocation6 + $0x880] sm:$0xff]
    %v353 = vld [vmem:[#allocation6 + $0x888] sm:$0xff]
    %v354 = vld [vmem:[#allocation6 + $0x890] sm:$0xff]
    %v355 = vld [vmem:[#allocation6 + $0x898] sm:$0xff]
    %v356 = vld [vmem:[#allocation6 + $0x8a0] sm:$0xff]
    %v357 = vld [vmem:[#allocation6 + $0x8a8] sm:$0xff]
    %v358 = vld [vmem:[#allocation6 + $0x8b0] sm:$0xff]
    %v359 = vld [vmem:[#allocation6 + $0x8b8] sm:$0xff]
    %v360 = vld [vmem:[#allocation6 + $0x8c0] sm:$0xff]
    %v361 = vld [vmem:[#allocation6 + $0x8c8] sm:$0xff]
    %v362 = vld [vmem:[#allocation6 + $0x8d0] sm:$0xff]
    %v363 = vld [vmem:[#allocation6 + $0x8d8] sm:$0xff]
    %v364 = vld [vmem:[#allocation6 + $0x8e0] sm:$0xff]
    %v365 = vld [vmem:[#allocation6 + $0x8e8] sm:$0xff]
    %v366 = vld [vmem:[#allocation6 + $0x8f0] sm:$0xff]
    %v367 = vld [vmem:[#allocation6 + $0x8f8] sm:$0xff]
    %v368 = vld [vmem:[#allocation6 + $0x900] sm:$0xff]
    %v369 = vld [vmem:[#allocation6 + $0x908] sm:$0xff]
    %v370 = vld [vmem:[#allocation6 + $0x910] sm:$0xff]
    %v371 = vld [vmem:[#allocation6 + $0x918] sm:$0xff]
    %v372 = vld [vmem:[#allocation6 + $0x920] sm:$0xff]
    %v373 = vld [vmem:[#allocation6 + $0x928] sm:$0xff]
    %v374 = vld [vmem:[#allocation6 + $0x930] sm:$0xff]
    %v375 = vld [vmem:[#allocation6 + $0x938] sm:$0xff]
    %v376 = vld [vmem:[#allocation6 + $0x940] sm:$0xff]
    %v377 = vld [vmem:[#allocation6 + $0x948] sm:$0xff]
    %v378 = vld [vmem:[#allocation6 + $0x950] sm:$0xff]
    %v379 = vld [vmem:[#allocation6 + $0x958] sm:$0xff]
    %v380 = vld [vmem:[#allocation6 + $0x960] sm:$0xff]
    %v381 = vld [vmem:[#allocation6 + $0x968] sm:$0xff]
    %v382 = vld [vmem:[#allocation6 + $0x970] sm:$0xff]
    %v383 = vld [vmem:[#allocation6 + $0x978] sm:$0xff]
    %v384 = vld [vmem:[#allocation6 + $0x980] sm:$0xff]
    %v385 = vld [vmem:[#allocation6 + $0x988] sm:$0xff]
    %v386 = vld [vmem:[#allocation6 + $0x990] sm:$0xff]
    %v387 = vld [vmem:[#allocation6 + $0x998] sm:$0xff]
    %v388 = vld [vmem:[#allocation6 + $0x9a0] sm:$0xff]
    %v389 = vld [vmem:[#allocation6 + $0x9a8] sm:$0xff]
    %v390 = vld [vmem:[#allocation6 + $0x9b0] sm:$0xff]
    %v391 = vld [vmem:[#allocation6 + $0x9b8] sm:$0xff]
    %v392 = vld [vmem:[#allocation6 + $0x9c0] sm:$0xff]
    %v393 = vld [vmem:[#allocation6 + $0x9c8] sm:$0xff]
    %v394 = vld [vmem:[#allocation6 + $0x9d0] sm:$0xff]
    %v395 = vld [vmem:[#allocation6 + $0x9d8] sm:$0xff]
    %v396 = vld [vmem:[#allocation6 + $0x9e0] sm:$0xff]
    %v397 = vld [vmem:[#allocation6 + $0x9e8] sm:$0xff]
    %v398 = vld [vmem:[#allocation6 + $0x9f0] sm:$0xff]
    %v399 = vld [vmem:[#allocation6 + $0x9f8] sm:$0xff]
    %v400 = vld [vmem:[#allocation6 + $0xa00] sm:$0xff]
    %v401 = vld [vmem:[#allocation6 + $0xa08] sm:$0xff]
    %v402 = vld [vmem:[#allocation6 + $0xa10] sm:$0xff]
    %v403 = vld [vmem:[#allocation6 + $0xa18] sm:$0xff]
    %v404 = vld [vmem:[#allocation6 + $0xa20] sm:$0xff]
    %v405 = vld [vmem:[#allocation6 + $0xa28] sm:$0xff]
    %v406 = vld [vmem:[#allocation6 + $0xa30] sm:$0xff]
    %v407 = vld [vmem:[#allocation6 + $0xa38] sm:$0xff]
    %v408 = vld [vmem:[#allocation6 + $0xa40] sm:$0xff]
    %v409 = vld [vmem:[#allocation6 + $0xa48] sm:$0xff]
    %v410 = vld [vmem:[#allocation6 + $0xa50] sm:$0xff]
    %v411 = vld [vmem:[#allocation6 + $0xa58] sm:$0xff]
    %v412 = vld [vmem:[#allocation6 + $0xa60] sm:$0xff]
    %v413 = vld [vmem:[#allocation6 + $0xa68] sm:$0xff]
    %v414 = vld [vmem:[#allocation6 + $0xa70] sm:$0xff]
    %v415 = vld [vmem:[#allocation6 + $0xa78] sm:$0xff]
    %v416 = vld [vmem:[#allocation6 + $0xa80] sm:$0xff]
    %v417 = vld [vmem:[#allocation6 + $0xa88] sm:$0xff]
    %v418 = vld [vmem:[#allocation6 + $0xa90] sm:$0xff]
    %v419 = vld [vmem:[#allocation6 + $0xa98] sm:$0xff]
    %v420 = vld [vmem:[#allocation6 + $0xaa0] sm:$0xff]
    %v421 = vld [vmem:[#allocation6 + $0xaa8] sm:$0xff]
    %v422 = vld [vmem:[#allocation6 + $0xab0] sm:$0xff]
    %v423 = vld [vmem:[#allocation6 + $0xab8] sm:$0xff]
    %v424 = vld [vmem:[#allocation6 + $0xac0] sm:$0xff]
    %v425 = vld [vmem:[#allocation6 + $0xac8] sm:$0xff]
    %v426 = vld [vmem:[#allocation6 + $0xad0] sm:$0xff]
    %v427 = vld [vmem:[#allocation6 + $0xad8] sm:$0xff]
    %v428 = vld [vmem:[#allocation6 + $0xae0] sm:$0xff]
    %v429 = vld [vmem:[#allocation6 + $0xae8] sm:$0xff]
    %v430 = vld [vmem:[#allocation6 + $0xaf0] sm:$0xff]
    %v431 = vld [vmem:[#allocation6 + $0xaf8] sm:$0xff]
    %v432 = vld [vmem:[#allocation6 + $0xb00] sm:$0xff]
    %v433 = vld [vmem:[#allocation6 + $0xb08] sm:$0xff]
    %v434 = vld [vmem:[#allocation6 + $0xb10] sm:$0xff]
    %v435 = vld [vmem:[#allocation6 + $0xb18] sm:$0xff]
    %v436 = vld [vmem:[#allocation6 + $0xb20] sm:$0xff]
    %v437 = vld [vmem:[#allocation6 + $0xb28] sm:$0xff]
    %v438 = vld [vmem:[#allocation6 + $0xb30] sm:$0xff]
    %v439 = vld [vmem:[#allocation6 + $0xb38] sm:$0xff]
    %v440 = vld [vmem:[#allocation6 + $0xb40] sm:$0xff]
    %v441 = vld [vmem:[#allocation6 + $0xb48] sm:$0xff]
    %v442 = vld [vmem:[#allocation6 + $0xb50] sm:$0xff]
    %v443 = vld [vmem:[#allocation6 + $0xb58] sm:$0xff]
    %v444 = vld [vmem:[#allocation6 + $0xb60] sm:$0xff]
    %v445 = vld [vmem:[#allocation6 + $0xb68] sm:$0xff]
    %v446 = vld [vmem:[#allocation6 + $0xb70] sm:$0xff]
    %v447 = vld [vmem:[#allocation6 + $0xb78] sm:$0xff]
    %v448 = vld [vmem:[#allocation6 + $0xb80] sm:$0xff]
    %v449 = vld [vmem:[#allocation6 + $0xb88] sm:$0xff]
    %v450 = vld [vmem:[#allocation6 + $0xb90] sm:$0xff]
    %v451 = vld [vmem:[#allocation6 + $0xb98] sm:$0xff]
    %v452 = vld [vmem:[#allocation6 + $0xba0] sm:$0xff]
    %v453 = vld [vmem:[#allocation6 + $0xba8] sm:$0xff]
    %v454 = vld [vmem:[#allocation6 + $0xbb0] sm:$0xff]
    %v455 = vld [vmem:[#allocation6 + $0xbb8] sm:$0xff]
    %v456 = vld [vmem:[#allocation6 + $0xbc0] sm:$0xff]
    %v457 = vld [vmem:[#allocation6 + $0xbc8] sm:$0xff]
    %v458 = vld [vmem:[#allocation6 + $0xbd0] sm:$0xff]
    %v459 = vld [vmem:[#allocation6 + $0xbd8] sm:$0xff]
    %v460 = vld [vmem:[#allocation6 + $0xbe0] sm:$0xff]
    %v461 = vld [vmem:[#allocation6 + $0xbe8] sm:$0xff]
    %v462 = vld [vmem:[#allocation6 + $0xbf0] sm:$0xff]
    %v463 = vld [vmem:[#allocation6 + $0xbf8] sm:$0xff]
    %v464 = vld [vmem:[#allocation6 + $0xc00] sm:$0xff]
    %v465 = vld [vmem:[#allocation6 + $0xc08] sm:$0xff]
    %v466 = vld [vmem:[#allocation6 + $0xc10] sm:$0xff]
    %v467 = vld [vmem:[#allocation6 + $0xc18] sm:$0xff]
    %v468 = vld [vmem:[#allocation6 + $0xc20] sm:$0xff]
    %v469 = vld [vmem:[#allocation6 + $0xc28] sm:$0xff]
    %v470 = vld [vmem:[#allocation6 + $0xc30] sm:$0xff]
    %v471 = vld [vmem:[#allocation6 + $0xc38] sm:$0xff]
    %v472 = vld [vmem:[#allocation6 + $0xc40] sm:$0xff]
    %v473 = vld [vmem:[#allocation6 + $0xc48] sm:$0xff]
    %v474 = vld [vmem:[#allocation6 + $0xc50] sm:$0xff]
    %v475 = vld [vmem:[#allocation6 + $0xc58] sm:$0xff]
    %v476 = vld [vmem:[#allocation6 + $0xc60] sm:$0xff]
    %v477 = vld [vmem:[#allocation6 + $0xc68] sm:$0xff]
    %v478 = vld [vmem:[#allocation6 + $0xc70] sm:$0xff]
    %v479 = vld [vmem:[#allocation6 + $0xc78] sm:$0xff]
    %v480 = vld [vmem:[#allocation6 + $0xc80] sm:$0xff]
    %v481 = vld [vmem:[#allocation6 + $0xc88] sm:$0xff]
    %v482 = vld [vmem:[#allocation6 + $0xc90] sm:$0xff]
    %v483 = vld [vmem:[#allocation6 + $0xc98] sm:$0xff]
    %v484 = vld [vmem:[#allocation6 + $0xca0] sm:$0xff]
    %v485 = vld [vmem:[#allocation6 + $0xca8] sm:$0xff]
    %v486 = vld [vmem:[#allocation6 + $0xcb0] sm:$0xff]
    %v487 = vld [vmem:[#allocation6 + $0xcb8] sm:$0xff]
    %v488 = vld [vmem:[#allocation6 + $0xcc0] sm:$0xff]
    %v489 = vld [vmem:[#allocation6 + $0xcc8] sm:$0xff]
    %v490 = vld [vmem:[#allocation6 + $0xcd0] sm:$0xff]
    %v491 = vld [vmem:[#allocation6 + $0xcd8] sm:$0xff]
    %v492 = vld [vmem:[#allocation6 + $0xce0] sm:$0xff]
    %v493 = vld [vmem:[#allocation6 + $0xce8] sm:$0xff]
    %v494 = vld [vmem:[#allocation6 + $0xcf0] sm:$0xff]
    %v495 = vld [vmem:[#allocation6 + $0xcf8] sm:$0xff]
    %v496 = vld [vmem:[#allocation6 + $0xd00] sm:$0xff]
    %v497 = vld [vmem:[#allocation6 + $0xd08] sm:$0xff]
    %v498 = vld [vmem:[#allocation6 + $0xd10] sm:$0xff]
    %v499 = vld [vmem:[#allocation6 + $0xd18] sm:$0xff]
    %v500 = vld [vmem:[#allocation6 + $0xd20] sm:$0xff]
    %v501 = vld [vmem:[#allocation6 + $0xd28] sm:$0xff]
    %v502 = vld [vmem:[#allocation6 + $0xd30] sm:$0xff]
    %v503 = vld [vmem:[#allocation6 + $0xd38] sm:$0xff]
    %v504 = vld [vmem:[#allocation6 + $0xd40] sm:$0xff]
    %v505 = vld [vmem:[#allocation6 + $0xd48] sm:$0xff]
    %v506 = vld [vmem:[#allocation6 + $0xd50] sm:$0xff]
    %v507 = vld [vmem:[#allocation6 + $0xd58] sm:$0xff]
    %v508 = vld [vmem:[#allocation6 + $0xd60] sm:$0xff]
    %v509 = vld [vmem:[#allocation6 + $0xd68] sm:$0xff]
    %v510 = vld [vmem:[#allocation6 + $0xd70] sm:$0xff]
    %v511 = vld [vmem:[#allocation6 + $0xd78] sm:$0xff]
    %v512 = vld [vmem:[#allocation6 + $0xd80] sm:$0xff]
    %v513 = vld [vmem:[#allocation6 + $0xd88] sm:$0xff]
    %v514 = vld [vmem:[#allocation6 + $0xd90] sm:$0xff]
    %v515 = vld [vmem:[#allocation6 + $0xd98] sm:$0xff]
    %v516 = vld [vmem:[#allocation6 + $0xda0] sm:$0xff]
    %v517 = vld [vmem:[#allocation6 + $0xda8] sm:$0xff]
    %v518 = vld [vmem:[#allocation6 + $0xdb0] sm:$0xff]
    %v519 = vld [vmem:[#allocation6 + $0xdb8] sm:$0xff]
    %v520 = vld [vmem:[#allocation6 + $0xdc0] sm:$0xff]
    %v521 = vld [vmem:[#allocation6 + $0xdc8] sm:$0xff]
    %v522 = vld [vmem:[#allocation6 + $0xdd0] sm:$0xff]
    %v523 = vld [vmem:[#allocation6 + $0xdd8] sm:$0xff]
    %v524 = vld [vmem:[#allocation6 + $0xde0] sm:$0xff]
    %v525 = vld [vmem:[#allocation6 + $0xde8] sm:$0xff]
    %v526 = vld [vmem:[#allocation6 + $0xdf0] sm:$0xff]
    %v527 = vld [vmem:[#allocation6 + $0xdf8] sm:$0xff]
    %s528 = sld [smem:[#allocation2]]
    %v529 = vstv %s528
    %562 = vst [vmem:[#allocation1] ss:$9 sm:$0xff] %v48
    %s563 = scalar_lea.vmem [#allocation1], 1
    %564 = vst [vmem:[%s563] ss:$9 sm:$0xff] %v52
    %s565 = scalar_lea.vmem [#allocation1], 2
    %566 = vst [vmem:[%s565] ss:$9 sm:$0xff] %v56
    %s567 = scalar_lea.vmem [#allocation1], 3
    %568 = vst [vmem:[%s567] ss:$9 sm:$0xff] %v60
    %s569 = scalar_lea.vmem [#allocation1], 4
    %570 = vst [vmem:[%s569] ss:$9 sm:$0xff] %v64
    %s571 = scalar_lea.vmem [#allocation1], 5
    %572 = vst [vmem:[%s571] ss:$9 sm:$0xff] %v68
    %s573 = scalar_lea.vmem [#allocation1], 6
    %574 = vst [vmem:[%s573] ss:$9 sm:$0xff] %v72
    %s575 = scalar_lea.vmem [#allocation1], 7
    %576 = vst [vmem:[%s575] ss:$9 sm:$0xff] %v76
    %v577 = vld [vmem:[#allocation1] sm:$0xff]
    %v578 = vld [vmem:[#allocation1 + $0x9] sm:$0xff]
    %v579 = vld [vmem:[#allocation1 + $0x12] sm:$0xff]
    %v580 = vld [vmem:[#allocation1 + $0x1b] sm:$0xff]
    %v581 = vld [vmem:[#allocation1 + $0x24] sm:$0xff]
    %v582 = vld [vmem:[#allocation1 + $0x2d] sm:$0xff]
    %v583 = vld [vmem:[#allocation1 + $0x36] sm:$0xff]
    %v584 = vld [vmem:[#allocation1 + $0x3f] sm:$0xff]
    %585 = vst [vmem:[#allocation1] ss:$9 sm:$0xff] %v49
    %586 = vst [vmem:[%s563] ss:$9 sm:$0xff] %v53
    %587 = vst [vmem:[%s565] ss:$9 sm:$0xff] %v57
    %588 = vst [vmem:[%s567] ss:$9 sm:$0xff] %v61
    %589 = vst [vmem:[%s569] ss:$9 sm:$0xff] %v65
    %590 = vst [vmem:[%s571] ss:$9 sm:$0xff] %v69
    %591 = vst [vmem:[%s573] ss:$9 sm:$0xff] %v73
    %592 = vst [vmem:[%s575] ss:$9 sm:$0xff] %v77
    %v593 = vld [vmem:[#allocation1] sm:$0xff]
    %v594 = vld [vmem:[#allocation1 + $0x9] sm:$0xff]
    %v595 = vld [vmem:[#allocation1 + $0x12] sm:$0xff]
    %v596 = vld [vmem:[#allocation1 + $0x1b] sm:$0xff]
    %v597 = vld [vmem:[#allocation1 + $0x24] sm:$0xff]
    %v598 = vld [vmem:[#allocation1 + $0x2d] sm:$0xff]
    %v599 = vld [vmem:[#allocation1 + $0x36] sm:$0xff]
    %v600 = vld [vmem:[#allocation1 + $0x3f] sm:$0xff]
    %601 = vst [vmem:[#allocation1] ss:$9 sm:$0xff] %v50
    %602 = vst [vmem:[%s563] ss:$9 sm:$0xff] %v54
    %603 = vst [vmem:[%s565] ss:$9 sm:$0xff] %v58
    %604 = vst [vmem:[%s567] ss:$9 sm:$0xff] %v62
    %605 = vst [vmem:[%s569] ss:$9 sm:$0xff] %v66
    %606 = vst [vmem:[%s571] ss:$9 sm:$0xff] %v70
    %607 = vst [vmem:[%s573] ss:$9 sm:$0xff] %v74
    %608 = vst [vmem:[%s575] ss:$9 sm:$0xff] %v78
    %v609 = vld [vmem:[#allocation1] sm:$0xff]
    %v610 = vld [vmem:[#allocation1 + $0x9] sm:$0xff]
    %v611 = vld [vmem:[#allocation1 + $0x12] sm:$0xff]
    %v612 = vld [vmem:[#allocation1 + $0x1b] sm:$0xff]
    %v613 = vld [vmem:[#allocation1 + $0x24] sm:$0xff]
    %v614 = vld [vmem:[#allocation1 + $0x2d] sm:$0xff]
    %v615 = vld [vmem:[#allocation1 + $0x36] sm:$0xff]
    %v616 = vld [vmem:[#allocation1 + $0x3f] sm:$0xff]
    %617 = vst [vmem:[#allocation1] ss:$9 sm:$0xff] %v51
    %618 = vst [vmem:[%s563] ss:$9 sm:$0xff] %v55
    %619 = vst [vmem:[%s565] ss:$9 sm:$0xff] %v59
    %620 = vst [vmem:[%s567] ss:$9 sm:$0xff] %v63
    %621 = vst [vmem:[%s569] ss:$9 sm:$0xff] %v67
    %622 = vst [vmem:[%s571] ss:$9 sm:$0xff] %v71
    %623 = vst [vmem:[%s573] ss:$9 sm:$0xff] %v75
    %624 = vst [vmem:[%s575] ss:$9 sm:$0xff] %v79
    %v625 = vld [vmem:[#allocation1] sm:$0xff]
    %v626 = vld [vmem:[#allocation1 + $0x9] sm:$0xff]
    %v627 = vld [vmem:[#allocation1 + $0x12] sm:$0xff]
    %v628 = vld [vmem:[#allocation1 + $0x1b] sm:$0xff]
    %657 = vmatpush.msra.mxu0 %v95
    %658 = vmatpush.msra.mxu0 %v94
    %659 = vmatpush.msra.mxu0 %v93
    %660 = vmatpush.msra.mxu0 %v92
    %661 = vmatpush.msra.mxu0 %v91
    %662 = vmatpush.msra.mxu0 %v90
    %663 = vmatpush.msra.mxu0 %v89
    %664 = vmatpush.msra.mxu0 %v88
    %665 = vmatpush.msra.mxu0 %v87
    %666 = vmatpush.msra.mxu0 %v86
    %667 = vmatpush.msra.mxu0 %v85
    %668 = vmatpush.msra.mxu0 %v84
    %669 = vmatpush.msra.mxu0 %v83
    %670 = vmatpush.msra.mxu0 %v82
    %671 = vmatpush.msra.mxu0 %v81
    %672 = vmatpush.msra.mxu0 %v80
    %673 = vmatmul.f32.gmra.mxu0 %v577
    %v674 = vpop.f32.mrf.mxu0
    %v675 = vadd.f32 %v529, %v674
    %676 = vdwg.mxu0
    %677 = vmatpush.msra.mxu0 %v111
    %678 = vmatpush.msra.mxu0 %v110
    %679 = vmatpush.msra.mxu0 %v109
    %680 = vmatpush.msra.mxu0 %v108
    %681 = vmatpush.msra.mxu0 %v107
    %682 = vmatpush.msra.mxu0 %v106
    %683 = vmatpush.msra.mxu0 %v105
    %684 = vmatpush.msra.mxu0 %v104
    %685 = vmatpush.msra.mxu0 %v103
    %686 = vmatpush.msra.mxu0 %v102
    %687 = vmatpush.msra.mxu0 %v101
    %688 = vmatpush.msra.mxu0 %v100
    %689 = vmatpush.msra.mxu0 %v99
    %690 = vmatpush.msra.mxu0 %v98
    %691 = vmatpush.msra.mxu0 %v97
    %692 = vmatpush.msra.mxu0 %v96
    %693 = vmatmul.f32.gmra.mxu0 %v578
    %v694 = vpop.f32.mrf.mxu0
    %v695 = vadd.f32 %v675, %v694
    %696 = vdwg.mxu0
    %697 = vmatpush.msra.mxu0 %v127
    %698 = vmatpush.msra.mxu0 %v126
    %699 = vmatpush.msra.mxu0 %v125
    %700 = vmatpush.msra.mxu0 %v124
    %701 = vmatpush.msra.mxu0 %v123
    %702 = vmatpush.msra.mxu0 %v122
    %703 = vmatpush.msra.mxu0 %v121
    %704 = vmatpush.msra.mxu0 %v120
    %705 = vmatpush.msra.mxu0 %v119
    %706 = vmatpush.msra.mxu0 %v118
    %707 = vmatpush.msra.mxu0 %v117
    %708 = vmatpush.msra.mxu0 %v116
    %709 = vmatpush.msra.mxu0 %v115
    %710 = vmatpush.msra.mxu0 %v114
    %711 = vmatpush.msra.mxu0 %v113
    %712 = vmatpush.msra.mxu0 %v112
    %713 = vmatmul.f32.gmra.mxu0 %v579
    %v714 = vpop.f32.mrf.mxu0
    %v715 = vadd.f32 %v695, %v714
    %716 = vdwg.mxu0
    %717 = vmatpush.msra.mxu0 %v143
    %718 = vmatpush.msra.mxu0 %v142
    %719 = vmatpush.msra.mxu0 %v141
    %720 = vmatpush.msra.mxu0 %v140
    %721 = vmatpush.msra.mxu0 %v139
    %722 = vmatpush.msra.mxu0 %v138
    %723 = vmatpush.msra.mxu0 %v137
    %724 = vmatpush.msra.mxu0 %v136
    %725 = vmatpush.msra.mxu0 %v135
    %726 = vmatpush.msra.mxu0 %v134
    %727 = vmatpush.msra.mxu0 %v133
    %728 = vmatpush.msra.mxu0 %v132
    %729 = vmatpush.msra.mxu0 %v131
    %730 = vmatpush.msra.mxu0 %v130
    %731 = vmatpush.msra.mxu0 %v129
    %732 = vmatpush.msra.mxu0 %v128
    %733 = vmatmul.f32.gmra.mxu0 %v580
    %v734 = vpop.f32.mrf.mxu0
    %v735 = vadd.f32 %v715, %v734
    %736 = vdwg.mxu0
    %737 = vmatpush.msra.mxu0 %v159
    %738 = vmatpush.msra.mxu0 %v158
    %739 = vmatpush.msra.mxu0 %v157
    %740 = vmatpush.msra.mxu0 %v156
    %741 = vmatpush.msra.mxu0 %v155
    %742 = vmatpush.msra.mxu0 %v154
    %743 = vmatpush.msra.mxu0 %v153
    %744 = vmatpush.msra.mxu0 %v152
    %745 = vmatpush.msra.mxu0 %v151
    %746 = vmatpush.msra.mxu0 %v150
    %747 = vmatpush.msra.mxu0 %v149
    %748 = vmatpush.msra.mxu0 %v148
    %749 = vmatpush.msra.mxu0 %v147
    %750 = vmatpush.msra.mxu0 %v146
    %751 = vmatpush.msra.mxu0 %v145
    %752 = vmatpush.msra.mxu0 %v144
    %753 = vmatmul.f32.gmra.mxu0 %v581
    %v754 = vpop.f32.mrf.mxu0
    %v755 = vadd.f32 %v735, %v754
    %756 = vdwg.mxu0
    %757 = vmatpush.msra.mxu0 %v175
    %758 = vmatpush.msra.mxu0 %v174
    %759 = vmatpush.msra.mxu0 %v173
    %760 = vmatpush.msra.mxu0 %v172
    %761 = vmatpush.msra.mxu0 %v171
    %762 = vmatpush.msra.mxu0 %v170
    %763 = vmatpush.msra.mxu0 %v169
    %764 = vmatpush.msra.mxu0 %v168
    %765 = vmatpush.msra.mxu0 %v167
    %766 = vmatpush.msra.mxu0 %v166
    %767 = vmatpush.msra.mxu0 %v165
    %768 = vmatpush.msra.mxu0 %v164
    %769 = vmatpush.msra.mxu0 %v163
    %770 = vmatpush.msra.mxu0 %v162
    %771 = vmatpush.msra.mxu0 %v161
    %772 = vmatpush.msra.mxu0 %v160
    %773 = vmatmul.f32.gmra.mxu0 %v582
    %v774 = vpop.f32.mrf.mxu0
    %v775 = vadd.f32 %v755, %v774
    %776 = vdwg.mxu0
    %777 = vmatpush.msra.mxu0 %v191
    %778 = vmatpush.msra.mxu0 %v190
    %779 = vmatpush.msra.mxu0 %v189
    %780 = vmatpush.msra.mxu0 %v188
    %781 = vmatpush.msra.mxu0 %v187
    %782 = vmatpush.msra.mxu0 %v186
    %783 = vmatpush.msra.mxu0 %v185
    %784 = vmatpush.msra.mxu0 %v184
    %785 = vmatpush.msra.mxu0 %v183
    %786 = vmatpush.msra.mxu0 %v182
    %787 = vmatpush.msra.mxu0 %v181
    %788 = vmatpush.msra.mxu0 %v180
    %789 = vmatpush.msra.mxu0 %v179
    %790 = vmatpush.msra.mxu0 %v178
    %791 = vmatpush.msra.mxu0 %v177
    %792 = vmatpush.msra.mxu0 %v176
    %793 = vmatmul.f32.gmra.mxu0 %v583
    %v794 = vpop.f32.mrf.mxu0
    %v795 = vadd.f32 %v775, %v794
    %796 = vdwg.mxu0
    %797 = vmatpush.msra.mxu0 %v207
    %798 = vmatpush.msra.mxu0 %v206
    %799 = vmatpush.msra.mxu0 %v205
    %800 = vmatpush.msra.mxu0 %v204
    %801 = vmatpush.msra.mxu0 %v203
    %802 = vmatpush.msra.mxu0 %v202
    %803 = vmatpush.msra.mxu0 %v201
    %804 = vmatpush.msra.mxu0 %v200
    %805 = vmatpush.msra.mxu0 %v199
    %806 = vmatpush.msra.mxu0 %v198
    %807 = vmatpush.msra.mxu0 %v197
    %808 = vmatpush.msra.mxu0 %v196
    %809 = vmatpush.msra.mxu0 %v195
    %810 = vmatpush.msra.mxu0 %v194
    %811 = vmatpush.msra.mxu0 %v193
    %812 = vmatpush.msra.mxu0 %v192
    %813 = vmatmul.f32.gmra.mxu0 %v584
    %v814 = vpop.f32.mrf.mxu0
    %v815 = vadd.f32 %v795, %v814
    %816 = vdwg.mxu0
    %817 = vmatpush.msra.mxu0 %v223
    %818 = vmatpush.msra.mxu0 %v222
    %819 = vmatpush.msra.mxu0 %v221
    %820 = vmatpush.msra.mxu0 %v220
    %821 = vmatpush.msra.mxu0 %v219
    %822 = vmatpush.msra.mxu0 %v218
    %823 = vmatpush.msra.mxu0 %v217
    %824 = vmatpush.msra.mxu0 %v216
    %825 = vmatpush.msra.mxu0 %v215
    %826 = vmatpush.msra.mxu0 %v214
    %827 = vmatpush.msra.mxu0 %v213
    %828 = vmatpush.msra.mxu0 %v212
    %829 = vmatpush.msra.mxu0 %v211
    %830 = vmatpush.msra.mxu0 %v210
    %831 = vmatpush.msra.mxu0 %v209
    %832 = vmatpush.msra.mxu0 %v208
    %833 = vmatmul.f32.gmra.mxu0 %v593
    %v834 = vpop.f32.mrf.mxu0
    %v835 = vadd.f32 %v815, %v834
    %836 = vdwg.mxu0
    %837 = vmatpush.msra.mxu0 %v239
    %838 = vmatpush.msra.mxu0 %v238
    %839 = vmatpush.msra.mxu0 %v237
    %840 = vmatpush.msra.mxu0 %v236
    %841 = vmatpush.msra.mxu0 %v235
    %842 = vmatpush.msra.mxu0 %v234
    %843 = vmatpush.msra.mxu0 %v233
    %844 = vmatpush.msra.mxu0 %v232
    %845 = vmatpush.msra.mxu0 %v231
    %846 = vmatpush.msra.mxu0 %v230
    %847 = vmatpush.msra.mxu0 %v229
    %848 = vmatpush.msra.mxu0 %v228
    %849 = vmatpush.msra.mxu0 %v227
    %850 = vmatpush.msra.mxu0 %v226
    %851 = vmatpush.msra.mxu0 %v225
    %852 = vmatpush.msra.mxu0 %v224
    %853 = vmatmul.f32.gmra.mxu0 %v594
    %v854 = vpop.f32.mrf.mxu0
    %v855 = vadd.f32 %v835, %v854
    %856 = vdwg.mxu0
    %857 = vmatpush.msra.mxu0 %v255
    %858 = vmatpush.msra.mxu0 %v254
    %859 = vmatpush.msra.mxu0 %v253
    %860 = vmatpush.msra.mxu0 %v252
    %861 = vmatpush.msra.mxu0 %v251
    %862 = vmatpush.msra.mxu0 %v250
    %863 = vmatpush.msra.mxu0 %v249
    %864 = vmatpush.msra.mxu0 %v248
    %865 = vmatpush.msra.mxu0 %v247
    %866 = vmatpush.msra.mxu0 %v246
    %867 = vmatpush.msra.mxu0 %v245
    %868 = vmatpush.msra.mxu0 %v244
    %869 = vmatpush.msra.mxu0 %v243
    %870 = vmatpush.msra.mxu0 %v242
    %871 = vmatpush.msra.mxu0 %v241
    %872 = vmatpush.msra.mxu0 %v240
    %873 = vmatmul.f32.gmra.mxu0 %v595
    %v874 = vpop.f32.mrf.mxu0
    %v875 = vadd.f32 %v855, %v874
    %876 = vdwg.mxu0
    %877 = vmatpush.msra.mxu0 %v271
    %878 = vmatpush.msra.mxu0 %v270
    %879 = vmatpush.msra.mxu0 %v269
    %880 = vmatpush.msra.mxu0 %v268
    %881 = vmatpush.msra.mxu0 %v267
    %882 = vmatpush.msra.mxu0 %v266
    %883 = vmatpush.msra.mxu0 %v265
    %884 = vmatpush.msra.mxu0 %v264
    %885 = vmatpush.msra.mxu0 %v263
    %886 = vmatpush.msra.mxu0 %v262
    %887 = vmatpush.msra.mxu0 %v261
    %888 = vmatpush.msra.mxu0 %v260
    %889 = vmatpush.msra.mxu0 %v259
    %890 = vmatpush.msra.mxu0 %v258
    %891 = vmatpush.msra.mxu0 %v257
    %892 = vmatpush.msra.mxu0 %v256
    %893 = vmatmul.f32.gmra.mxu0 %v596
    %v894 = vpop.f32.mrf.mxu0
    %v895 = vadd.f32 %v875, %v894
    %896 = vdwg.mxu0
    %897 = vmatpush.msra.mxu0 %v287
    %898 = vmatpush.msra.mxu0 %v286
    %899 = vmatpush.msra.mxu0 %v285
    %900 = vmatpush.msra.mxu0 %v284
    %901 = vmatpush.msra.mxu0 %v283
    %902 = vmatpush.msra.mxu0 %v282
    %903 = vmatpush.msra.mxu0 %v281
    %904 = vmatpush.msra.mxu0 %v280
    %905 = vmatpush.msra.mxu0 %v279
    %906 = vmatpush.msra.mxu0 %v278
    %907 = vmatpush.msra.mxu0 %v277
    %908 = vmatpush.msra.mxu0 %v276
    %909 = vmatpush.msra.mxu0 %v275
    %910 = vmatpush.msra.mxu0 %v274
    %911 = vmatpush.msra.mxu0 %v273
    %912 = vmatpush.msra.mxu0 %v272
    %913 = vmatmul.f32.gmra.mxu0 %v597
    %v914 = vpop.f32.mrf.mxu0
    %v915 = vadd.f32 %v895, %v914
    %916 = vdwg.mxu0
    %917 = vmatpush.msra.mxu0 %v303
    %918 = vmatpush.msra.mxu0 %v302
    %919 = vmatpush.msra.mxu0 %v301
    %920 = vmatpush.msra.mxu0 %v300
    %921 = vmatpush.msra.mxu0 %v299
    %922 = vmatpush.msra.mxu0 %v298
    %923 = vmatpush.msra.mxu0 %v297
    %924 = vmatpush.msra.mxu0 %v296
    %925 = vmatpush.msra.mxu0 %v295
    %926 = vmatpush.msra.mxu0 %v294
    %927 = vmatpush.msra.mxu0 %v293
    %928 = vmatpush.msra.mxu0 %v292
    %929 = vmatpush.msra.mxu0 %v291
    %930 = vmatpush.msra.mxu0 %v290
    %931 = vmatpush.msra.mxu0 %v289
    %932 = vmatpush.msra.mxu0 %v288
    %933 = vmatmul.f32.gmra.mxu0 %v598
    %v934 = vpop.f32.mrf.mxu0
    %v935 = vadd.f32 %v915, %v934
    %936 = vdwg.mxu0
    %937 = vmatpush.msra.mxu0 %v319
    %938 = vmatpush.msra.mxu0 %v318
    %939 = vmatpush.msra.mxu0 %v317
    %940 = vmatpush.msra.mxu0 %v316
    %941 = vmatpush.msra.mxu0 %v315
    %942 = vmatpush.msra.mxu0 %v314
    %943 = vmatpush.msra.mxu0 %v313
    %944 = vmatpush.msra.mxu0 %v312
    %945 = vmatpush.msra.mxu0 %v311
    %946 = vmatpush.msra.mxu0 %v310
    %947 = vmatpush.msra.mxu0 %v309
    %948 = vmatpush.msra.mxu0 %v308
    %949 = vmatpush.msra.mxu0 %v307
    %950 = vmatpush.msra.mxu0 %v306
    %951 = vmatpush.msra.mxu0 %v305
    %952 = vmatpush.msra.mxu0 %v304
    %953 = vmatmul.f32.gmra.mxu0 %v599
    %v954 = vpop.f32.mrf.mxu0
    %v955 = vadd.f32 %v935, %v954
    %956 = vdwg.mxu0
    %957 = vmatpush.msra.mxu0 %v335
    %958 = vmatpush.msra.mxu0 %v334
    %959 = vmatpush.msra.mxu0 %v333
    %960 = vmatpush.msra.mxu0 %v332
    %961 = vmatpush.msra.mxu0 %v331
    %962 = vmatpush.msra.mxu0 %v330
    %963 = vmatpush.msra.mxu0 %v329
    %964 = vmatpush.msra.mxu0 %v328
    %965 = vmatpush.msra.mxu0 %v327
    %966 = vmatpush.msra.mxu0 %v326
    %967 = vmatpush.msra.mxu0 %v325
    %968 = vmatpush.msra.mxu0 %v324
    %969 = vmatpush.msra.mxu0 %v323
    %970 = vmatpush.msra.mxu0 %v322
    %971 = vmatpush.msra.mxu0 %v321
    %972 = vmatpush.msra.mxu0 %v320
    %973 = vmatmul.f32.gmra.mxu0 %v600
    %v974 = vpop.f32.mrf.mxu0
    %v975 = vadd.f32 %v955, %v974
    %976 = vdwg.mxu0
    %977 = vmatpush.msra.mxu0 %v351
    %978 = vmatpush.msra.mxu0 %v350
    %979 = vmatpush.msra.mxu0 %v349
    %980 = vmatpush.msra.mxu0 %v348
    %981 = vmatpush.msra.mxu0 %v347
    %982 = vmatpush.msra.mxu0 %v346
    %983 = vmatpush.msra.mxu0 %v345
    %984 = vmatpush.msra.mxu0 %v344
    %985 = vmatpush.msra.mxu0 %v343
    %986 = vmatpush.msra.mxu0 %v342
    %987 = vmatpush.msra.mxu0 %v341
    %988 = vmatpush.msra.mxu0 %v340
    %989 = vmatpush.msra.mxu0 %v339
    %990 = vmatpush.msra.mxu0 %v338
    %991 = vmatpush.msra.mxu0 %v337
    %992 = vmatpush.msra.mxu0 %v336
    %993 = vmatmul.f32.gmra.mxu0 %v609
    %v994 = vpop.f32.mrf.mxu0
    %v995 = vadd.f32 %v975, %v994
    %996 = vdwg.mxu0
    %997 = vmatpush.msra.mxu0 %v367
    %998 = vmatpush.msra.mxu0 %v366
    %999 = vmatpush.msra.mxu0 %v365
    %1000 = vmatpush.msra.mxu0 %v364
    %1001 = vmatpush.msra.mxu0 %v363
    %1002 = vmatpush.msra.mxu0 %v362
    %1003 = vmatpush.msra.mxu0 %v361
    %1004 = vmatpush.msra.mxu0 %v360
    %1005 = vmatpush.msra.mxu0 %v359
    %1006 = vmatpush.msra.mxu0 %v358
    %1007 = vmatpush.msra.mxu0 %v357
    %1008 = vmatpush.msra.mxu0 %v356
    %1009 = vmatpush.msra.mxu0 %v355
    %1010 = vmatpush.msra.mxu0 %v354
    %1011 = vmatpush.msra.mxu0 %v353
    %1012 = vmatpush.msra.mxu0 %v352
    %1013 = vmatmul.f32.gmra.mxu0 %v610
    %v1014 = vpop.f32.mrf.mxu0
    %v1015 = vadd.f32 %v995, %v1014
    %1016 = vdwg.mxu0
    %1017 = vmatpush.msra.mxu0 %v383
    %1018 = vmatpush.msra.mxu0 %v382
    %1019 = vmatpush.msra.mxu0 %v381
    %1020 = vmatpush.msra.mxu0 %v380
    %1021 = vmatpush.msra.mxu0 %v379
    %1022 = vmatpush.msra.mxu0 %v378
    %1023 = vmatpush.msra.mxu0 %v377
    %1024 = vmatpush.msra.mxu0 %v376
    %1025 = vmatpush.msra.mxu0 %v375
    %1026 = vmatpush.msra.mxu0 %v374
    %1027 = vmatpush.msra.mxu0 %v373
    %1028 = vmatpush.msra.mxu0 %v372
    %1029 = vmatpush.msra.mxu0 %v371
    %1030 = vmatpush.msra.mxu0 %v370
    %1031 = vmatpush.msra.mxu0 %v369
    %1032 = vmatpush.msra.mxu0 %v368
    %1033 = vmatmul.f32.gmra.mxu0 %v611
    %v1034 = vpop.f32.mrf.mxu0
    %v1035 = vadd.f32 %v1015, %v1034
    %1036 = vdwg.mxu0
    %1037 = vmatpush.msra.mxu0 %v399
    %1038 = vmatpush.msra.mxu0 %v398
    %1039 = vmatpush.msra.mxu0 %v397
    %1040 = vmatpush.msra.mxu0 %v396
    %1041 = vmatpush.msra.mxu0 %v395
    %1042 = vmatpush.msra.mxu0 %v394
    %1043 = vmatpush.msra.mxu0 %v393
    %1044 = vmatpush.msra.mxu0 %v392
    %1045 = vmatpush.msra.mxu0 %v391
    %1046 = vmatpush.msra.mxu0 %v390
    %1047 = vmatpush.msra.mxu0 %v389
    %1048 = vmatpush.msra.mxu0 %v388
    %1049 = vmatpush.msra.mxu0 %v387
    %1050 = vmatpush.msra.mxu0 %v386
    %1051 = vmatpush.msra.mxu0 %v385
    %1052 = vmatpush.msra.mxu0 %v384
    %1053 = vmatmul.f32.gmra.mxu0 %v612
    %v1054 = vpop.f32.mrf.mxu0
    %v1055 = vadd.f32 %v1035, %v1054
    %1056 = vdwg.mxu0
    %1057 = vmatpush.msra.mxu0 %v415
    %1058 = vmatpush.msra.mxu0 %v414
    %1059 = vmatpush.msra.mxu0 %v413
    %1060 = vmatpush.msra.mxu0 %v412
    %1061 = vmatpush.msra.mxu0 %v411
    %1062 = vmatpush.msra.mxu0 %v410
    %1063 = vmatpush.msra.mxu0 %v409
    %1064 = vmatpush.msra.mxu0 %v408
    %1065 = vmatpush.msra.mxu0 %v407
    %1066 = vmatpush.msra.mxu0 %v406
    %1067 = vmatpush.msra.mxu0 %v405
    %1068 = vmatpush.msra.mxu0 %v404
    %1069 = vmatpush.msra.mxu0 %v403
    %1070 = vmatpush.msra.mxu0 %v402
    %1071 = vmatpush.msra.mxu0 %v401
    %1072 = vmatpush.msra.mxu0 %v400
    %1073 = vmatmul.f32.gmra.mxu0 %v613
    %v1074 = vpop.f32.mrf.mxu0
    %v1075 = vadd.f32 %v1055, %v1074
    %1076 = vdwg.mxu0
    %1077 = vmatpush.msra.mxu0 %v431
    %1078 = vmatpush.msra.mxu0 %v430
    %1079 = vmatpush.msra.mxu0 %v429
    %1080 = vmatpush.msra.mxu0 %v428
    %1081 = vmatpush.msra.mxu0 %v427
    %1082 = vmatpush.msra.mxu0 %v426
    %1083 = vmatpush.msra.mxu0 %v425
    %1084 = vmatpush.msra.mxu0 %v424
    %1085 = vmatpush.msra.mxu0 %v423
    %1086 = vmatpush.msra.mxu0 %v422
    %1087 = vmatpush.msra.mxu0 %v421
    %1088 = vmatpush.msra.mxu0 %v420
    %1089 = vmatpush.msra.mxu0 %v419
    %1090 = vmatpush.msra.mxu0 %v418
    %1091 = vmatpush.msra.mxu0 %v417
    %1092 = vmatpush.msra.mxu0 %v416
    %1093 = vmatmul.f32.gmra.mxu0 %v614
    %v1094 = vpop.f32.mrf.mxu0
    %v1095 = vadd.f32 %v1075, %v1094
    %1096 = vdwg.mxu0
    %1097 = vmatpush.msra.mxu0 %v447
    %1098 = vmatpush.msra.mxu0 %v446
    %1099 = vmatpush.msra.mxu0 %v445
    %1100 = vmatpush.msra.mxu0 %v444
    %1101 = vmatpush.msra.mxu0 %v443
    %1102 = vmatpush.msra.mxu0 %v442
    %1103 = vmatpush.msra.mxu0 %v441
    %1104 = vmatpush.msra.mxu0 %v440
    %1105 = vmatpush.msra.mxu0 %v439
    %1106 = vmatpush.msra.mxu0 %v438
    %1107 = vmatpush.msra.mxu0 %v437
    %1108 = vmatpush.msra.mxu0 %v436
    %1109 = vmatpush.msra.mxu0 %v435
    %1110 = vmatpush.msra.mxu0 %v434
    %1111 = vmatpush.msra.mxu0 %v433
    %1112 = vmatpush.msra.mxu0 %v432
    %1113 = vmatmul.f32.gmra.mxu0 %v615
    %v1114 = vpop.f32.mrf.mxu0
    %v1115 = vadd.f32 %v1095, %v1114
    %1116 = vdwg.mxu0
    %1117 = vmatpush.msra.mxu0 %v463
    %1118 = vmatpush.msra.mxu0 %v462
    %1119 = vmatpush.msra.mxu0 %v461
    %1120 = vmatpush.msra.mxu0 %v460
    %1121 = vmatpush.msra.mxu0 %v459
    %1122 = vmatpush.msra.mxu0 %v458
    %1123 = vmatpush.msra.mxu0 %v457
    %1124 = vmatpush.msra.mxu0 %v456
    %1125 = vmatpush.msra.mxu0 %v455
    %1126 = vmatpush.msra.mxu0 %v454
    %1127 = vmatpush.msra.mxu0 %v453
    %1128 = vmatpush.msra.mxu0 %v452
    %1129 = vmatpush.msra.mxu0 %v451
    %1130 = vmatpush.msra.mxu0 %v450
    %1131 = vmatpush.msra.mxu0 %v449
    %1132 = vmatpush.msra.mxu0 %v448
    %1133 = vmatmul.f32.gmra.mxu0 %v616
    %v1134 = vpop.f32.mrf.mxu0
    %v1135 = vadd.f32 %v1115, %v1134
    %1136 = vdwg.mxu0
    %1137 = vmatpush.msra.mxu0 %v479
    %1138 = vmatpush.msra.mxu0 %v478
    %1139 = vmatpush.msra.mxu0 %v477
    %1140 = vmatpush.msra.mxu0 %v476
    %1141 = vmatpush.msra.mxu0 %v475
    %1142 = vmatpush.msra.mxu0 %v474
    %1143 = vmatpush.msra.mxu0 %v473
    %1144 = vmatpush.msra.mxu0 %v472
    %1145 = vmatpush.msra.mxu0 %v471
    %1146 = vmatpush.msra.mxu0 %v470
    %1147 = vmatpush.msra.mxu0 %v469
    %1148 = vmatpush.msra.mxu0 %v468
    %1149 = vmatpush.msra.mxu0 %v467
    %1150 = vmatpush.msra.mxu0 %v466
    %1151 = vmatpush.msra.mxu0 %v465
    %1152 = vmatpush.msra.mxu0 %v464
    %1153 = vmatmul.f32.gmra.mxu0 %v625
    %v1154 = vpop.f32.mrf.mxu0
    %v1155 = vadd.f32 %v1135, %v1154
    %1156 = vdwg.mxu0
    %1157 = vmatpush.msra.mxu0 %v495
    %1158 = vmatpush.msra.mxu0 %v494
    %1159 = vmatpush.msra.mxu0 %v493
    %1160 = vmatpush.msra.mxu0 %v492
    %1161 = vmatpush.msra.mxu0 %v491
    %1162 = vmatpush.msra.mxu0 %v490
    %1163 = vmatpush.msra.mxu0 %v489
    %1164 = vmatpush.msra.mxu0 %v488
    %1165 = vmatpush.msra.mxu0 %v487
    %1166 = vmatpush.msra.mxu0 %v486
    %1167 = vmatpush.msra.mxu0 %v485
    %1168 = vmatpush.msra.mxu0 %v484
    %1169 = vmatpush.msra.mxu0 %v483
    %1170 = vmatpush.msra.mxu0 %v482
    %1171 = vmatpush.msra.mxu0 %v481
    %1172 = vmatpush.msra.mxu0 %v480
    %1173 = vmatmul.f32.gmra.mxu0 %v626
    %v1174 = vpop.f32.mrf.mxu0
    %v1175 = vadd.f32 %v1155, %v1174
    %1176 = vdwg.mxu0
    %1177 = vmatpush.msra.mxu0 %v511
    %1178 = vmatpush.msra.mxu0 %v510
    %1179 = vmatpush.msra.mxu0 %v509
    %1180 = vmatpush.msra.mxu0 %v508
    %1181 = vmatpush.msra.mxu0 %v507
    %1182 = vmatpush.msra.mxu0 %v506
    %1183 = vmatpush.msra.mxu0 %v505
    %1184 = vmatpush.msra.mxu0 %v504
    %1185 = vmatpush.msra.mxu0 %v503
    %1186 = vmatpush.msra.mxu0 %v502
    %1187 = vmatpush.msra.mxu0 %v501
    %1188 = vmatpush.msra.mxu0 %v500
    %1189 = vmatpush.msra.mxu0 %v499
    %1190 = vmatpush.msra.mxu0 %v498
    %1191 = vmatpush.msra.mxu0 %v497
    %1192 = vmatpush.msra.mxu0 %v496
    %1193 = vmatmul.f32.gmra.mxu0 %v627
    %v1194 = vpop.f32.mrf.mxu0
    %v1195 = vadd.f32 %v1175, %v1194
    %1196 = vdwg.mxu0
    %1197 = vmatpush.msra.mxu0 %v527
    %1198 = vmatpush.msra.mxu0 %v526
    %1199 = vmatpush.msra.mxu0 %v525
    %1200 = vmatpush.msra.mxu0 %v524
    %1201 = vmatpush.msra.mxu0 %v523
    %1202 = vmatpush.msra.mxu0 %v522
    %1203 = vmatpush.msra.mxu0 %v521
    %1204 = vmatpush.msra.mxu0 %v520
    %1205 = vmatpush.msra.mxu0 %v519
    %1206 = vmatpush.msra.mxu0 %v518
    %1207 = vmatpush.msra.mxu0 %v517
    %1208 = vmatpush.msra.mxu0 %v516
    %1209 = vmatpush.msra.mxu0 %v515
    %1210 = vmatpush.msra.mxu0 %v514
    %1211 = vmatpush.msra.mxu0 %v513
    %1212 = vmatpush.msra.mxu0 %v512
    %1213 = vmatmul.f32.gmra.mxu0 %v628
    %v1214 = vpop.f32.mrf.mxu0
    %v1215 = vadd.f32 %v1195, %v1214
    %1216 = vdwg.mxu0
    %v1217 = vsub.f32 0.0, %v1215
    %v1218 = vmul.f32 %v1217, 1.442695
    %v1219 = vpow.pop %v1218
    %v1220 = vadd.f32 %v1219, 1.0
    %v1221 = vrcp.pop %v1220
    %v1222 = vmul.f32 %v1220, %v1221
    %v1223 = vsub.f32 1.0, %v1222
    %v1224 = vmul.f32 %v1221, %v1223
    %v1225 = vadd.f32 %v1221, %v1224
    %vm1226 = vweird.f32 %v1220
    %vm1227 = vweird.f32 %v1221
    %vm1228 = vmor %vm1226, %vm1227
    %v1229 = vsel %vm1228, %v1221, %v1225
    %v1230 = vand.u32 2147483647, %v1220
    %vm1231 = vcmp.eq.f32.partialorder %v1230, 8.507059e+37
    %v1232 = vand.u32 %v1220, 2147483648
    %v1233 = vor.u32 1.1754944e-38, %v1232
    %v1234 = vsel %vm1231, %v1233, %v1229
    %v1235 = vmul.f32 1.0, %v1234
    %1236 = vst [vmem:[#allocation8] sm:$0xff] %v1235
    // Predicated region
    $region22: #{tpu_custom_call.1} parent=1 // pred_check
      _
    $region23: #{tpu_custom_call.1} parent=1 // pred_check_branch
      %1238 = sbr.rel (0) target = $region25
    $region24: #{tpu_custom_call.1} parent=1 // pred_region
      %1240 = vsyncadd [#allocation5], 0
      %s1242 = sshll.u32 [#allocation8], 4
      %s1243 = int_to_ptr.vmem [resolvable:$true] %s1242
      %s1244 = sshll.u32 %s3, 4
      %s1245 = int_to_ptr.hbm [resolvable:$true] %s1244
      %1247 = dma.vmem_to_hbm [thread:$0]  %s1243, 128, %s1245, [#allocation5]
    $region25: #{tpu_custom_call.1} parent=1 // pred_fallthru
      _
    // Predicated region
    $region26: #{tpu_custom_call.1} parent=1 // pred_check
      _
    $region27: #{tpu_custom_call.1} parent=1 // pred_check_branch
      %1249 = sbr.rel (0) target = $region29
    $region28: #{tpu_custom_call.1} parent=1 // pred_region
      %1251 = dma.done [#allocation5], 128
    $region29: #{tpu_custom_call.1} parent=1 // pred_fallthru
      _
    %1252 = vsyncpa [#allocation4], 1
    %1253 = vsyncpa [#allocation7], 1
    %1254 = vsyncpa [#allocation5], 1

</llo_original>
